<compile_context>
chip_gen: v6e
topology: v6e:2x2x1
jax: 0.10.0
libtpu: 0.0.40
codegen_flags: <defaults>
</compile_context>

<pallas_src>
import functools

import jax
import jax.numpy as jnp
import numpy as np
from jax.experimental import pallas as pl
from jax.experimental.pallas import tpu as pltpu

_TL = 128               # lane width
_LOG_TILE_TARGET = 18   # 2^18 configurations per tile (1 MiB f32 energy tile)
_MAX_CHUNK = 4          # high-bit steps fused per grid iteration


def _single_step_kernel(elow_ref, augt_ref, out_ref):
    # One tile covers every configuration: Boltzmann weights + all lane-partial
    # reductions (row 0 = Z lane partials, rows 1.. = sublane-bit marginals).
    wgt = jnp.exp(elow_ref[...])                                    # (TS, TL)
    out_ref[...] = jnp.dot(augt_ref[...], wgt,
                           preferred_element_type=jnp.float32)[None]


def _make_multi_step_kernel(chunk, chunks_per_split):
    def kernel(elow_ref, aug_ref, augt_ref, fstep_ref, hb_ref,
               out_lo_ref, out_hi_ref, acc_lo, acc_hi):
        s = pl.program_id(1)

        @pl.when(s == 0)
        def _init():
            acc_lo[...] = jnp.zeros_like(acc_lo)
            acc_hi[...] = jnp.zeros_like(acc_hi)

        @pl.loop(0, chunk)
        def _step(t):
            # Per-step energy delta of every config: one small MXU matmul.
            # (ones column -> e_step + lane-field row; bit columns -> sublane fields)
            step_tile = jnp.dot(aug_ref[...], fstep_ref[t],
                                preferred_element_type=jnp.float32)   # (TS, TL)
            wgt = jnp.exp(elow_ref[...] + step_tile)                  # (TS, TL)
            # Z lane partials (row 0) + sublane-bit marginal lane partials via MXU.
            contrib = jnp.dot(augt_ref[...], wgt,
                              preferred_element_type=jnp.float32)     # (K, TL)
            acc_lo[...] = acc_lo[...] + contrib
            acc_hi[...] = acc_hi[...] + hb_ref[t] * contrib[0:1, :]

        @pl.when(s == chunks_per_split - 1)
        def _finalize():
            out_lo_ref[...] = acc_lo[...][None]
            out_hi_ref[...] = acc_hi[...][None]

    return kernel


@functools.partial(jax.jit, static_argnames=("log_tile",))
def exact_network_sampler_forward(W, b, c, beta=1.0, log_tile=_LOG_TILE_TARGET):
    """Exact Boltzmann marginals for a BM with W (H, V), b (V,), c (H,).

    Returns (vs, hs) with shapes (1, V) and (1, H): P(v_i = 1), P(h_j = 1).
    """
    H, V = W.shape
    N = V + H
    assert N <= 30, "exact enumeration limited to 2^30 configurations"

    # Static tiling configuration.
    NLOW = min(N, log_tile)             # config bits enumerated inside one tile
    NHIGH = N - NLOW                    # config bits enumerated by the grid
    LB = min(NLOW, 7)                   # lane bits (config index bits 0..6)
    NSUB = NLOW - LB                    # sublane (row) bits
    K = 1 + NSUB                        # [ones | sublane-bit columns]
    TS = max(1 << max(NLOW - 7, 0), 8)  # sublane extent of the tile
    total_steps = 1 << NHIGH
    P = 2 if total_steps >= 2 else 1    # megacore split (v7x); harmless on 1-TC parts
    steps_per_split = total_steps // P
    chunk = min(steps_per_split, _MAX_CHUNK)
    chunks_per_split = steps_per_split // chunk

    f32 = jnp.float32
    beta = jnp.asarray(beta, f32)
    Wb = beta * W.astype(f32)                                       # (H, V), beta folded
    theta = jnp.concatenate([beta * b.astype(f32).reshape(V),
                             beta * c.astype(f32).reshape(H)])      # (N,)
    CS = jnp.zeros((N, N), f32).at[V:, :V].set(Wb).at[:V, V:].set(Wb.T)
    # Upper bound of the exponent; subtracting keeps every Boltzmann weight <= 1
    # (cancels in the marginal / Z ratio).
    shift = jnp.sum(jnp.maximum(theta, 0.0)) + jnp.sum(jnp.maximum(Wb, 0.0))

    # Static 0/1 bit matrices (numpy -> compile-time constants).
    lanes = np.arange(_TL)
    rows = np.arange(TS)
    bitL = jnp.asarray(((lanes[:, None] >> np.arange(LB)[None, :]) & 1)
                       .astype(np.float32))                         # (TL, LB)
    bitS = jnp.asarray(((rows[:, None] >> np.arange(NSUB)[None, :]) & 1)
                       .astype(np.float32))                         # (TS, NSUB)

    th_lane, th_sub, th_high = theta[:LB], theta[7:NLOW], theta[NLOW:]
    CS_LL, CS_SS, CS_SL = CS[:LB, :LB], CS[7:NLOW, 7:NLOW], CS[7:NLOW, :LB]
    CS_HL, CS_HS, CS_HH = CS[NLOW:, :LB], CS[NLOW:, 7:NLOW], CS[NLOW:, NLOW:]

    # Tile-invariant (beta-folded, shifted) exponent of the low bits, (TS, TL).
    e_lane = bitL @ th_lane + 0.5 * jnp.sum((bitL @ CS_LL) * bitL, axis=1)   # (TL,)
    e_sub = bitS @ th_sub + 0.5 * jnp.sum((bitS @ CS_SS) * bitS, axis=1)     # (TS,)
    elow = (e_sub[:, None] + e_lane[None, :] + bitS @ CS_SL @ bitL.T) - shift
    if TS * _TL > (1 << NLOW):          # pad configs (only when total_steps == 1)
        klocal = rows[:, None] * _TL + lanes[None, :]
        elow = jnp.where(klocal < (1 << NLOW), elow, f32(-1e30))
    elow = elow.astype(f32)

    # [ones | sublane-bit columns]: LHS of the per-step energy matmul; transposed
    # form is the LHS of the Z / sublane-marginal reduction matmul.
    aug = jnp.concatenate([jnp.ones((TS, 1), f32), bitS], axis=1)   # (TS, K)
    augt = aug.T                                                    # (K, TS)

    if NHIGH == 0:
        out_lo = pl.pallas_call(
            _single_step_kernel,
            out_shape=jax.ShapeDtypeStruct((1, K, _TL), f32),
            grid_spec=pltpu.PrefetchScalarGridSpec(
                num_scalar_prefetch=0,
                grid=(1,),
                in_specs=[pl.BlockSpec((TS, _TL), lambda i: (0, 0)),
                          pl.BlockSpec((K, TS), lambda i: (0, 0))],
                out_specs=pl.BlockSpec((1, K, _TL), lambda i: (0, 0, 0))),
            compiler_params=pltpu.CompilerParams(
                dimension_semantics=("arbitrary",)),
        )(elow, augt)
        acc_lo = out_lo[0]                                          # (K, TL)
        acc_hi = jnp.zeros((0, _TL), f32)
    else:
        # Per-step scalar work precomputed in JAX and streamed per step (removes
        # the in-kernel scalar dependency chain entirely).
        steps = np.arange(total_steps)
        hbM = jnp.asarray(((steps[:, None] >> np.arange(NHIGH)[None, :]) & 1)
                          .astype(np.float32))                      # (T, NHIGH)
        e_step = hbM @ th_high + 0.5 * jnp.sum((hbM @ CS_HH) * hbM, axis=1)  # (T,)
        row0 = e_step[:, None] + hbM @ CS_HL @ bitL.T                        # (T, TL)
        f_sub = hbM @ CS_HS                                                  # (T, NSUB)
        fstep = jnp.concatenate(
            [row0[:, None, :],
             jnp.broadcast_to(f_sub[:, :, None], (total_steps, NSUB, _TL))],
            axis=1)                                                          # (T, K, TL)
        hb_in = jnp.broadcast_to(hbM[:, :, None],
                                 (total_steps, NHIGH, _TL)).astype(f32)      # (T, NHIGH, TL)

        kernel = _make_multi_step_kernel(chunk, chunks_per_split)
        resident2 = lambda p, s: (0, 0)
        stream3 = lambda p, s: (p * chunks_per_split + s, 0, 0)
        out_lo, out_hi = pl.pallas_call(
            kernel,
            out_shape=(jax.ShapeDtypeStruct((P, K, _TL), f32),
                       jax.ShapeDtypeStruct((P, NHIGH, _TL), f32)),
            grid_spec=pltpu.PrefetchScalarGridSpec(
                num_scalar_prefetch=0,
                grid=(P, chunks_per_split),
                in_specs=[pl.BlockSpec((TS, _TL), resident2),         # elow (resident)
                          pl.BlockSpec((TS, K), resident2),           # [1 | bitS]
                          pl.BlockSpec((K, TS), resident2),           # [1 | bitS]^T
                          pl.BlockSpec((chunk, K, _TL), stream3),     # per-step energy rows
                          pl.BlockSpec((chunk, NHIGH, _TL), stream3)],  # per-step high bits
                out_specs=(pl.BlockSpec((1, K, _TL), lambda p, s: (p, 0, 0)),
                           pl.BlockSpec((1, NHIGH, _TL), lambda p, s: (p, 0, 0))),
                scratch_shapes=[pltpu.VMEM((K, _TL), f32),
                                pltpu.VMEM((NHIGH, _TL), f32)]),
            compiler_params=pltpu.CompilerParams(
                dimension_semantics=("parallel", "arbitrary")),
        )(elow, aug, augt, fstep, hb_in)
        acc_lo = jnp.sum(out_lo, axis=0)                            # (K, TL)
        acc_hi = jnp.sum(out_hi, axis=0)                            # (NHIGH, TL)

    # Final reductions / normalization (tiny) in JAX.
    z_row = acc_lo[0]                                               # (TL,)
    Z = jnp.sum(z_row)
    m_lane = bitL.T @ z_row                                         # (LB,)
    m_sub = jnp.sum(acc_lo[1:], axis=1)                             # (NSUB,)
    m_high = jnp.sum(acc_hi, axis=1)                                # (NHIGH,)
    prob = (jnp.concatenate([m_lane, m_sub, m_high]) / Z)[None, :]  # (1, N)
    return prob[:, :V], prob[:, V:]


def _reference(W, b, c, beta):
    """Pure numpy reference of the exact marginals (float64)."""
    W = np.asarray(W, np.float64)
    b = np.asarray(b, np.float64).reshape(-1)
    c = np.asarray(c, np.float64).reshape(-1)
    H, V = W.shape
    N = V + H
    S = 1 << N
    idx = np.arange(S, dtype=np.int64)[:, None]
    bits = ((idx >> np.arange(N, dtype=np.int64)[None, :]) & 1).astype(np.float64)
    xv, xh = bits[:, :V], bits[:, V:]
    energy = -(xv @ b + xh @ c + np.einsum("sh,hv,sv->s", xh, W, xv))
    w = np.exp(-beta * energy)
    Pr = w / w.sum()
    prob = Pr @ bits
    return prob[None, :V], prob[None, V:]


if __name__ == "__main__":
    def _run_case(V, H, beta, seed, **kw):
        key = jax.random.PRNGKey(seed)
        kW, kb, kc = jax.random.split(key, 3)
        W = 0.1 * jax.random.normal(kW, (H, V), dtype=jnp.float32)   # model.W (H, V)
        b = 0.1 * jax.random.normal(kb, (V,), dtype=jnp.float32)     # model.b (V,)
        c = 0.1 * jax.random.normal(kc, (H,), dtype=jnp.float32)     # model.c (H,)
        vs, hs = exact_network_sampler_forward(W, b, c, beta=beta, **kw)
        vs, hs = jax.block_until_ready((vs, hs))
        assert vs.shape == (1, V) and hs.shape == (1, H)
        vs_ref, hs_ref = _reference(W, b, c, beta)
        np.testing.assert_allclose(np.asarray(vs), vs_ref, rtol=2e-3, atol=1e-5)
        np.testing.assert_allclose(np.asarray(hs), hs_ref, rtol=2e-3, atol=1e-5)

    # 2^12 configurations: single-step path, one 32x128 tile.
    _run_case(V=8, H=4, beta=1.0, seed=0)
    # 2^18 configurations: single-step path with the full 2048x128 tile.
    _run_case(V=16, H=2, beta=1.3, seed=1)
    # Same model, forced multi-step path: 2^13-config tile, 32 high-bit steps,
    # 2 parallel splits, 4-step chunks, streamed per-step energy rows.
    _run_case(V=16, H=2, beta=0.7, seed=2, log_tile=13)
    # Tiny model exercising the padded / masked tile (2^5 configs in an 8x128 tile).
    _run_case(V=3, H=2, beta=1.0, seed=3)

    print("KERNEL_OK")
</pallas_src>

<mosaic_0001>
module attributes {stable_mosaic.version = 11 : i64} {
  func.func @_single_step_kernel(%arg0: i32, %arg1: memref<32x128xf32, #tpu.memory_space<vmem>>, %arg2: memref<6x32xf32, #tpu.memory_space<vmem>>, %arg3: memref<1x6x128xf32, #tpu.memory_space<vmem>>) attributes {dimension_semantics = [#tpu.dimension_semantics<arbitrary>], iteration_bounds = array<i64: 1>, scalar_prefetch = 0 : i64, scratch_operands = 0 : i64, tpu.core_type = #tpu.core_type<tc>, window_params = [{pipeline_mode = #tpu.pipeline_mode<synchronous>, transform_indices = @transform_0, window_bounds = array<i64: 32, 128>}, {pipeline_mode = #tpu.pipeline_mode<synchronous>, transform_indices = @transform_1, window_bounds = array<i64: 6, 32>}, {pipeline_mode = #tpu.pipeline_mode<synchronous>, transform_indices = @transform_2, window_bounds = array<i64: 1, 6, 128>}]} {
    %c0 = arith.constant 0 : index
    %c0_0 = arith.constant 0 : index
    %0 = vector.load %arg1[%c0, %c0_0] : memref<32x128xf32, #tpu.memory_space<vmem>>, vector<32x128xf32>
    %1 = math.exp %0 : vector<32x128xf32>
    %c0_1 = arith.constant 0 : index
    %c0_2 = arith.constant 0 : index
    %2 = vector.load %arg2[%c0_1, %c0_2] : memref<6x32xf32, #tpu.memory_space<vmem>>, vector<6x32xf32>
    %cst = arith.constant dense<0.000000e+00> : vector<6x128xf32>
    %3 = tpu.matmul %2, %1, %cst {dimension_numbers = #tpu.dot_dimension_numbers<[1], [0], [0], [1], [0, 0, 1, 1], [], []>} : vector<6x32xf32>, vector<32x128xf32>, vector<6x128xf32> -> vector<6x128xf32>
    %4 = vector.shape_cast %3 : vector<6x128xf32> to vector<1x6x128xf32>
    %c0_3 = arith.constant 0 : index
    %c0_4 = arith.constant 0 : index
    %c0_5 = arith.constant 0 : index
    %5 = vector.load %arg3[%c0_3, %c0_4, %c0_5] : memref<1x6x128xf32, #tpu.memory_space<vmem>>, vector<1x6x128xf32>
    tpu.vector_store %arg3[%c0_3, %c0_4, %c0_5], %4 {strides = array<i32>} : memref<1x6x128xf32, #tpu.memory_space<vmem>>, vector<1x6x128xf32>,
    return
  }
  func.func @transform_0(%arg0: i32) -> (i32, i32) {
    %c0_i32 = arith.constant 0 : i32
    %c0_i32_0 = arith.constant 0 : i32
    %c0_i32_1 = arith.constant 0 : i32
    return %c0_i32, %c0_i32_0 : i32, i32
  }
  func.func @transform_1(%arg0: i32) -> (i32, i32) {
    %c0_i32 = arith.constant 0 : i32
    %c0_i32_0 = arith.constant 0 : i32
    %c0_i32_1 = arith.constant 0 : i32
    return %c0_i32, %c0_i32_0 : i32, i32
  }
  func.func @transform_2(%arg0: i32) -> (i32, i32, i32) {
    %c0_i32 = arith.constant 0 : i32
    %c0_i32_0 = arith.constant 0 : i32
    %c0_i32_1 = arith.constant 0 : i32
    %c0_i32_2 = arith.constant 0 : i32
    return %c0_i32, %c0_i32_0, %c0_i32_1 : i32, i32, i32
  }
}

</mosaic_0001>

<llo_original>
// kernel: exact_network_sampler_forward.1
$region0: #{exact_network_sampler_forward.1}
  #allocation0 [shape = 'u32[]', space=smem, size = 0x4, offset = 0x4, fixed_abs, tag = 'smem constant byte address 0x4 - core index']
  #allocation1 [shape = 'u32[144,128]{1,0:T(1,128)}', space=vmem, size = 0x12000, scoped, tag = 'internal scratch']
  %s0 = inlined_call_operand.vmem [shape: f32[32,128], index: 0, kind: input, shape index: {}]
  %s1 = inlined_call_operand.vmem [shape: f32[6,32], index: 1, kind: input, shape index: {}]
  %s2 = inlined_call_operand.vmem [shape: f32[1,6,128], index: 2, kind: output, shape index: {}]
  %s3 = sld [smem:[#allocation0]]
  $region18: #{exact_network_sampler_forward.1} parent=0
    _
  %s5 = ssub.s32 1, %s3
  %s6 = scalar_select 0, %s5, %s3
  // Predicated region
  $region2: #{exact_network_sampler_forward.1} parent=0 // pred_check
    _
  $region3: #{exact_network_sampler_forward.1} parent=0 // pred_check_branch
    %8 = sbr.rel (0) target = $region5
  $region4: #{exact_network_sampler_forward.1} parent=0 // pred_region
    _
  $region5: #{exact_network_sampler_forward.1} parent=0 // pred_fallthru
    _
  // Predicated region
  $region6: #{exact_network_sampler_forward.1} parent=0 // pred_check
    _
  $region7: #{exact_network_sampler_forward.1} parent=0 // pred_check_branch
    %10 = sbr.rel (0) target = $region9
  $region8: #{exact_network_sampler_forward.1} parent=0 // pred_region
    _
  $region9: #{exact_network_sampler_forward.1} parent=0 // pred_fallthru
    _
  %v11 = vld [vmem:[%s0] sm:$0xff]
  %v12 = vld [vmem:[%s0 + $0x8] sm:$0xff]
  %v13 = vld [vmem:[%s0 + $0x10] sm:$0xff]
  %v14 = vld [vmem:[%s0 + $0x18] sm:$0xff]
  %v15 = vmul.f32 %v11, 1.442695
  %v16 = vpow.pop %v15
  %v17 = vmul.f32 %v12, 1.442695
  %v18 = vpow.pop %v17
  %v19 = vmul.f32 %v13, 1.442695
  %v20 = vpow.pop %v19
  %v21 = vmul.f32 %v14, 1.442695
  %v22 = vpow.pop %v21
  %v23 = vld [vmem:[%s1] sm:$0x3f]
  %vm24 = vcmask 261120
  %v26 = vsel %vm24, %v23, 0
  %28 = vmatprep.subr.mxu0 0.0
  %29 = vmatpush1.msra.mxu0 0.0
  %30 = vmatprep.subr.mxu0 0.0
  %31 = vmatpush1.msra.mxu0 0.0
  %32 = vmatprep.subr.mxu0 0.0
  %33 = vmatpush1.msra.mxu0 0.0
  %34 = vmatprep.subr.mxu0 0.0
  %35 = vmatpush1.msra.mxu0 0.0
  %36 = vmatprep.subr.mxu0 0.0
  %37 = vmatpush1.msra.mxu0 0.0
  %38 = vmatprep.subr.mxu0 0.0
  %39 = vmatpush1.msra.mxu0 0.0
  %40 = vmatprep.subr.mxu0 0.0
  %41 = vmatpush1.msra.mxu0 0.0
  %42 = vmatprep.subr.mxu0 0.0
  %43 = vmatpush1.msra.mxu0 0.0
  %44 = vmatprep.subr.mxu0 0.0
  %45 = vmatpush1.msra.mxu0 0.0
  %46 = vmatprep.subr.mxu0 0.0
  %47 = vmatpush1.msra.mxu0 0.0
  %48 = vmatprep.subr.mxu0 0.0
  %49 = vmatpush1.msra.mxu0 0.0
  %50 = vmatprep.subr.mxu0 0.0
  %51 = vmatpush1.msra.mxu0 0.0
  %52 = vmatprep.subr.mxu0 0.0
  %53 = vmatpush1.msra.mxu0 %v22
  %54 = vmatprep.subr.mxu0 0.0
  %55 = vmatpush1.msra.mxu0 %v20
  %56 = vmatprep.subr.mxu0 0.0
  %57 = vmatpush1.msra.mxu0 %v18
  %58 = vmatprep.subr.mxu0 0.0
  %59 = vmatpush1.msra.mxu0 %v16
  %60 = vmatprep.subr.mxu0 0.0
  %61 = vmatpush2.msra.mxu0 0.0
  %62 = vmatprep.subr.mxu0 0.0
  %63 = vmatpush2.msra.mxu0 0.0
  %64 = vmatprep.subr.mxu0 0.0
  %65 = vmatpush2.msra.mxu0 0.0
  %66 = vmatprep.subr.mxu0 0.0
  %67 = vmatpush2.msra.mxu0 0.0
  %68 = vmatprep.subr.mxu0 0.0
  %69 = vmatpush2.msra.mxu0 0.0
  %70 = vmatprep.subr.mxu0 0.0
  %71 = vmatpush2.msra.mxu0 0.0
  %72 = vmatprep.subr.mxu0 0.0
  %73 = vmatpush2.msra.mxu0 0.0
  %74 = vmatprep.subr.mxu0 0.0
  %75 = vmatpush2.msra.mxu0 0.0
  %76 = vmatprep.subr.mxu0 0.0
  %77 = vmatpush2.msra.mxu0 0.0
  %78 = vmatprep.subr.mxu0 0.0
  %79 = vmatpush2.msra.mxu0 0.0
  %80 = vmatprep.subr.mxu0 0.0
  %81 = vmatpush2.msra.mxu0 0.0
  %82 = vmatprep.subr.mxu0 0.0
  %83 = vmatpush2.msra.mxu0 0.0
  %84 = vmatprep.subr.mxu0 0.0
  %85 = vmatpush2.msra.mxu0 0.0
  %86 = vmatprep.subr.mxu0 0.0
  %87 = vmatpush2.msra.mxu0 0.0
  %88 = vmatprep.subr.mxu0 0.0
  %89 = vmatpush2.msra.mxu0 0.0
  %90 = vmatprep.subr.mxu0 0.0
  %91 = vmatpush2.msra.mxu0 0.0
  %92 = vmatprep.mubr.f32.mxu0 0.0
  %93 = vmatmul.mubr.f32.gmra.mxu0 %v26
  %v94 = vpop.f32.mrf.mxu0
  %v95 = vadd.f32 0.0, %v94
  %v96 = vpop.f32.mrf.mxu0
  %97 = vdwg.mxu0
  %98 = vst [vmem:[%s2] sm:$0x3f] %v95
  // Predicated region
  $region10: #{exact_network_sampler_forward.1} parent=0 // pred_check
    _
  $region11: #{exact_network_sampler_forward.1} parent=0 // pred_check_branch
    %100 = sbr.rel (0) target = $region13
  $region12: #{exact_network_sampler_forward.1} parent=0 // pred_region
    _
  $region13: #{exact_network_sampler_forward.1} parent=0 // pred_fallthru
    _
  // Predicated region
  $region14: #{exact_network_sampler_forward.1} parent=0 // pred_check
    _
  $region15: #{exact_network_sampler_forward.1} parent=0 // pred_check_branch
    %102 = sbr.rel (0) target = $region17
  $region16: #{exact_network_sampler_forward.1} parent=0 // pred_region
    _
  $region17: #{exact_network_sampler_forward.1} parent=0 // pred_fallthru
    _

</llo_original>
